<compile_context>
chip_gen: v5e
topology: v5e:2x2
jax: 0.10.0
libtpu: 0.0.40
codegen_flags: <defaults>
</compile_context>

<pallas_src>
import numpy as np
import jax
import jax.numpy as jnp
from jax.experimental import pallas as pl
from jax.experimental.pallas import tpu as pltpu

EPSILON = float(np.finfo(float).eps)   # value used by the torch module (f64 eps)
TEMP = 1.0 / 10.0


def _gg_kernel(data_r_ref, data_c_ref, scale_ref, inv_c_ref, node_pc_ref,
               norm_ref, graph_ref, xr_ref, acc_ref):
    j = pl.program_id(1)

    @pl.when(j == 0)
    def _():
        # j-invariant per-row-tile work: pre-scaled LHS and accumulator reset.
        xr_ref[...] = data_r_ref[...] * scale_ref[...]               # (tm, F)
        acc_ref[...] = jnp.zeros_like(acc_ref)

    # RHS with the per-feature scale AND the per-column normalizer folded in
    # before the MXU:  (xr @ xc^T)[m,k] = gram[m,k] * inv[k]  == graph tile.
    xc = data_c_ref[...] * scale_ref[...] * inv_c_ref[...]           # (tn, F)

    # gram tile = X_rows . X_colsᵀ via dot_general (contract last dims) -> no
    # XLU transpose of the (tile,F) operand before the MXU push.
    graph_tile = jax.lax.dot_general(
        xr_ref[...], xc, (((1,), (1,)), ((), ())),
        preferred_element_type=jnp.float32)                          # (tm, tn)
    graph_ref[...] = graph_tile

    # Propagation: softmax([g@(1-p), g@p], axis=1) == [1-s, s] with
    # s = sigmoid(g @ (2p - 1)). One matvec per column tile, accumulated over j.
    d = 2.0 * node_pc_ref[...] - 1.0                                 # (tn, 1)
    acc_ref[...] += jnp.dot(graph_tile, d, preferred_element_type=jnp.float32)

    @pl.when(j == pl.num_programs(1) - 1)
    def _():
        s = jax.nn.sigmoid(acc_ref[...])                             # (tm, 1)
        col = jax.lax.broadcasted_iota(jnp.int32, norm_ref.shape, 1)
        norm_ref[...] = jnp.where(col == 0, 1.0 - s, s)              # [neg, pos]


def _round_up(x, m):
    return ((x + m - 1) // m) * m


def _pick_tile(n):
    # Largest tile in (512, 256, 128) that still yields >= 2 row tiles, so the
    # "parallel" axis can split across v7x's two TensorCores; otherwise 128.
    for t in (512, 256, 128):
        if _round_up(n, t) // t >= 2:
            return t
    return 128


def generalization_graph(data, node_p, logit_p, embedding_w, *, tile=None):
    """data: (N, F) f32; node_p: (N,) f32; logit_p, embedding_w: (F,) f32."""
    N, F = data.shape
    data = data.astype(jnp.float32)
    logit_p = logit_p.astype(jnp.float32)
    embedding_w = embedding_w.astype(jnp.float32)

    # --- O(F) eval-mode ConcreteDropout, literal to the torch forward ---------
    # TODO(synk): training mode would draw unif_noise via pltpu.prng_random_bits.
    dropout_p = jax.nn.sigmoid(logit_p)
    unif = jnp.full_like(logit_p, 0.5)
    approx = (jnp.log(dropout_p + EPSILON) - jnp.log(1.0 - dropout_p + EPSILON)
              + jnp.log(unif + EPSILON) - jnp.log(1.0 - unif + EPSILON))
    approx_output = jax.nn.sigmoid(approx / TEMP)
    scale = ((1.0 - approx_output) * jax.nn.sigmoid(embedding_w)).reshape(1, F)
    pw_vimp = 1.0 - dropout_p                                        # (F,)

    # --- O(N*F) column-normalizer pre-pass (per review: frees the in-kernel XLU
    #     reduce; negligible vs the N^2 graph traffic) --------------------------
    inv = 1.0 / ((data * scale).sum(axis=1, keepdims=True) + 1e-6)   # (N, 1)
    node_p2 = node_p.reshape(N, 1).astype(jnp.float32)

    # --- tiling: pad N up to a tile multiple (no full-extent VMEM-busting block)
    if tile is None:
        tile = _pick_tile(N)
    n_pad = _round_up(N, tile)
    if n_pad != N:
        pad = n_pad - N
        data = jnp.pad(data, ((0, pad), (0, 0)))
        node_p2 = jnp.pad(node_p2, ((0, pad), (0, 0)))
        inv = jnp.pad(inv, ((0, pad), (0, 0)))   # 0 -> padded graph cols are exactly 0
    n_tiles = n_pad // tile

    norm_node_p, graph = pl.pallas_call(
        _gg_kernel,
        grid=(n_tiles, n_tiles),
        in_specs=[
            pl.BlockSpec((tile, F), lambda i, j: (i, 0)),    # data, row tile
            pl.BlockSpec((tile, F), lambda i, j: (j, 0)),    # data, column tile
            pl.BlockSpec((1, F),    lambda i, j: (0, 0)),    # fused feature scale
            pl.BlockSpec((tile, 1), lambda i, j: (j, 0)),    # column normalizer
            pl.BlockSpec((tile, 1), lambda i, j: (j, 0)),    # node_p, column tile
        ],
        out_specs=(
            pl.BlockSpec((tile, 2), lambda i, j: (i, 0)),    # norm_node_p (row tile)
            pl.BlockSpec((tile, tile), lambda i, j: (i, j)), # graph tile
        ),
        out_shape=(
            jax.ShapeDtypeStruct((n_pad, 2), jnp.float32),
            jax.ShapeDtypeStruct((n_pad, n_pad), jnp.float32),
        ),
        scratch_shapes=[
            pltpu.VMEM((tile, F), jnp.float32),   # pre-scaled row tile (xr)
            pltpu.VMEM((tile, 1), jnp.float32),   # propagation accumulator
        ],
        compiler_params=pltpu.CompilerParams(
            dimension_semantics=("parallel", "arbitrary"),
            vmem_limit_bytes=48 * 1024 * 1024),   # headroom under v7x's 64 MiB
    )(data, data, scale, inv, node_p2)

    return norm_node_p[:N], graph[:N, :N], pw_vimp


def _reference(data, node_p, logit_p, embedding_w):
    """Pure-JAX reference of the PyTorch forward (eval mode), kept literal."""
    dropout_p = jax.nn.sigmoid(logit_p)
    unif = jnp.full_like(logit_p, 0.5)
    approx = (jnp.log(dropout_p + EPSILON) - jnp.log(1.0 - dropout_p + EPSILON)
              + jnp.log(unif + EPSILON) - jnp.log(1.0 - unif + EPSILON))
    approx_output = jax.nn.sigmoid(approx / TEMP)
    embedding_data = data * (1.0 - approx_output)
    pw_vimp = 1.0 - dropout_p
    ew = jax.nn.sigmoid(embedding_w)
    expanded = embedding_data * ew
    graph = (expanded @ expanded.T) / (expanded.sum(axis=1) + 1e-6)
    np2 = node_p.reshape(-1, 1)
    adj_pos = graph @ np2
    adj_neg = graph @ (1.0 - np2)
    comb = jnp.concatenate([adj_neg, adj_pos], axis=1)
    return jax.nn.softmax(comb, axis=1), graph, pw_vimp


def _check(norm, graph, vimp, data, node_p, logit_p, emb_w, rtol, atol):
    ref_norm, ref_graph, ref_vimp = _reference(data, node_p, logit_p, emb_w)
    np.testing.assert_allclose(np.asarray(norm), np.asarray(ref_norm), rtol=rtol, atol=atol)
    np.testing.assert_allclose(np.asarray(graph), np.asarray(ref_graph), rtol=rtol, atol=atol)
    np.testing.assert_allclose(np.asarray(vimp), np.asarray(ref_vimp), rtol=1e-6, atol=1e-6)


if __name__ == "__main__":
    key = jax.random.PRNGKey(0)
    k1, k2, k3, k4, k5, k6 = jax.random.split(key, 6)

    # --- small shape consistent with the module: N nodes, F node features ---
    N, F = 16, 32
    data = jax.random.normal(k1, (N, F), dtype=jnp.float32)
    node_p = jax.nn.sigmoid(jax.random.normal(k2, (N,), dtype=jnp.float32))
    logit_p = 0.1 * jax.random.normal(k3, (F,), dtype=jnp.float32)
    embedding_w = 0.1 * jax.random.normal(k4, (F,), dtype=jnp.float32)

    out = generalization_graph(data, node_p, logit_p, embedding_w)
    jax.block_until_ready(out)
    _check(*out, data, node_p, logit_p, embedding_w, rtol=1e-5, atol=1e-5)

    # --- exercise the tiled multi-program path (grid (2,2), parallel row tiles) ---
    N2, F2 = 256, 64
    data2 = jax.random.uniform(k5, (N2, F2), dtype=jnp.float32, minval=0.1, maxval=1.0)
    node_p2 = jax.random.uniform(k6, (N2,), dtype=jnp.float32, minval=0.05, maxval=0.95)
    logit_p2 = 0.1 * jax.random.normal(k3, (F2,), dtype=jnp.float32)
    embedding_w2 = 0.1 * jax.random.normal(k4, (F2,), dtype=jnp.float32)

    out2 = generalization_graph(data2, node_p2, logit_p2, embedding_w2, tile=128)
    jax.block_until_ready(out2)
    # slightly looser: f32 MXU accumulation-order differences on the tiled path
    _check(*out2, data2, node_p2, logit_p2, embedding_w2, rtol=1e-4, atol=1e-4)

    # --- exercise the padded + multi-tile path (N=200 -> padded to 256, trimmed) ---
    N3, F3 = 200, 64
    data3 = jax.random.uniform(k5, (N3, F3), dtype=jnp.float32, minval=0.1, maxval=1.0)
    node_p3 = jax.random.uniform(k6, (N3,), dtype=jnp.float32, minval=0.05, maxval=0.95)
    out3 = generalization_graph(data3, node_p3, logit_p2, embedding_w2)
    jax.block_until_ready(out3)
    _check(*out3, data3, node_p3, logit_p2, embedding_w2, rtol=1e-4, atol=1e-4)

    print("KERNEL_OK")
</pallas_src>

<mosaic_0001>
module attributes {stable_mosaic.version = 11 : i64} {
  func.func @_gg_kernel(%arg0: i32, %arg1: i32, %arg2: memref<128x32xf32, #tpu.memory_space<vmem>>, %arg3: memref<128x32xf32, #tpu.memory_space<vmem>>, %arg4: memref<1x32xf32, #tpu.memory_space<vmem>>, %arg5: memref<128x1xf32, #tpu.memory_space<vmem>>, %arg6: memref<128x1xf32, #tpu.memory_space<vmem>>, %arg7: memref<128x2xf32, #tpu.memory_space<vmem>>, %arg8: memref<128x128xf32, #tpu.memory_space<vmem>>, %arg9: memref<128x32xf32, #tpu.memory_space<vmem>>, %arg10: memref<128x1xf32, #tpu.memory_space<vmem>>) attributes {dimension_semantics = [#tpu.dimension_semantics<parallel>, #tpu.dimension_semantics<arbitrary>], iteration_bounds = array<i64: 1, 1>, scalar_prefetch = 0 : i64, scratch_operands = 2 : i64, tpu.core_type = #tpu.core_type<tc>, window_params = [{transform_indices = @transform_0, window_bounds = array<i64: 128, 32>}, {transform_indices = @transform_1, window_bounds = array<i64: 128, 32>}, {pipeline_mode = #tpu.pipeline_mode<synchronous>, transform_indices = @transform_2, window_bounds = array<i64: 1, 32>}, {transform_indices = @transform_3, window_bounds = array<i64: 128, 1>}, {transform_indices = @transform_4, window_bounds = array<i64: 128, 1>}, {transform_indices = @transform_5, window_bounds = array<i64: 128, 2>}, {transform_indices = @transform_6, window_bounds = array<i64: 128, 128>}]} {
    %c0_i32 = arith.constant 0 : i32
    %0 = arith.cmpi eq, %arg1, %c0_i32 : i32
    %1 = arith.extui %0 : i1 to i32
    %c0_i32_0 = arith.constant 0 : i32
    %2 = arith.cmpi ne, %1, %c0_i32_0 : i32
    scf.if %2 {
      %c0_21 = arith.constant 0 : index
      %c0_22 = arith.constant 0 : index
      %25 = vector.load %arg2[%c0_21, %c0_22] : memref<128x32xf32, #tpu.memory_space<vmem>>, vector<128x32xf32>
      %c0_23 = arith.constant 0 : index
      %c0_24 = arith.constant 0 : index
      %26 = vector.load %arg4[%c0_23, %c0_24] : memref<1x32xf32, #tpu.memory_space<vmem>>, vector<1x32xf32>
      %27 = vector.broadcast %26 : vector<1x32xf32> to vector<128x32xf32>
      %28 = arith.mulf %25, %27 : vector<128x32xf32>
      %c0_25 = arith.constant 0 : index
      %c0_26 = arith.constant 0 : index
      %29 = vector.load %arg9[%c0_25, %c0_26] : memref<128x32xf32, #tpu.memory_space<vmem>>, vector<128x32xf32>
      tpu.vector_store %arg9[%c0_25, %c0_26], %28 {strides = array<i32>} : memref<128x32xf32, #tpu.memory_space<vmem>>, vector<128x32xf32>,
      %cst_27 = arith.constant 0.000000e+00 : f32
      %30 = vector.broadcast %cst_27 : f32 to vector<128x1xf32>
      %c0_28 = arith.constant 0 : index
      %c0_29 = arith.constant 0 : index
      %31 = vector.load %arg10[%c0_28, %c0_29] : memref<128x1xf32, #tpu.memory_space<vmem>>, vector<128x1xf32>
      tpu.vector_store %arg10[%c0_28, %c0_29], %30 {strides = array<i32>} : memref<128x1xf32, #tpu.memory_space<vmem>>, vector<128x1xf32>,
    } else {
    }
    %c0 = arith.constant 0 : index
    %c0_1 = arith.constant 0 : index
    %3 = vector.load %arg3[%c0, %c0_1] : memref<128x32xf32, #tpu.memory_space<vmem>>, vector<128x32xf32>
    %c0_2 = arith.constant 0 : index
    %c0_3 = arith.constant 0 : index
    %4 = vector.load %arg4[%c0_2, %c0_3] : memref<1x32xf32, #tpu.memory_space<vmem>>, vector<1x32xf32>
    %5 = vector.broadcast %4 : vector<1x32xf32> to vector<128x32xf32>
    %6 = arith.mulf %3, %5 : vector<128x32xf32>
    %c0_4 = arith.constant 0 : index
    %c0_5 = arith.constant 0 : index
    %7 = vector.load %arg5[%c0_4, %c0_5] : memref<128x1xf32, #tpu.memory_space<vmem>>, vector<128x1xf32>
    %8 = vector.broadcast %7 : vector<128x1xf32> to vector<128x32xf32>
    %9 = arith.mulf %6, %8 : vector<128x32xf32>
    %c0_6 = arith.constant 0 : index
    %c0_7 = arith.constant 0 : index
    %10 = vector.load %arg9[%c0_6, %c0_7] : memref<128x32xf32, #tpu.memory_space<vmem>>, vector<128x32xf32>
    %cst = arith.constant dense<0.000000e+00> : vector<128x128xf32>
    %11 = tpu.matmul %10, %9, %cst {dimension_numbers = #tpu.dot_dimension_numbers<[1], [1], [0], [0], [0, 0, 1, 0], [], []>} : vector<128x32xf32>, vector<128x32xf32>, vector<128x128xf32> -> vector<128x128xf32>
    %c0_8 = arith.constant 0 : index
    %c0_9 = arith.constant 0 : index
    %12 = vector.load %arg8[%c0_8, %c0_9] : memref<128x128xf32, #tpu.memory_space<vmem>>, vector<128x128xf32>
    tpu.vector_store %arg8[%c0_8, %c0_9], %11 {strides = array<i32>} : memref<128x128xf32, #tpu.memory_space<vmem>>, vector<128x128xf32>,
    %c0_10 = arith.constant 0 : index
    %c0_11 = arith.constant 0 : index
    %13 = vector.load %arg6[%c0_10, %c0_11] : memref<128x1xf32, #tpu.memory_space<vmem>>, vector<128x1xf32>
    %cst_12 = arith.constant 2.000000e+00 : f32
    %14 = vector.broadcast %cst_12 : f32 to vector<128x1xf32>
    %15 = arith.mulf %14, %13 : vector<128x1xf32>
    %cst_13 = arith.constant 1.000000e+00 : f32
    %16 = vector.broadcast %cst_13 : f32 to vector<128x1xf32>
    %17 = arith.subf %15, %16 : vector<128x1xf32>
    %c0_14 = arith.constant 0 : index
    %c0_15 = arith.constant 0 : index
    %18 = vector.load %arg10[%c0_14, %c0_15] : memref<128x1xf32, #tpu.memory_space<vmem>>, vector<128x1xf32>
    %cst_16 = arith.constant dense<0.000000e+00> : vector<128x1xf32>
    %19 = tpu.matmul %11, %17, %cst_16 {dimension_numbers = #tpu.dot_dimension_numbers<[1], [0], [0], [1], [0, 0, 1, 1], [], []>} : vector<128x128xf32>, vector<128x1xf32>, vector<128x1xf32> -> vector<128x1xf32>
    %20 = arith.addf %18, %19 : vector<128x1xf32>
    %c0_17 = arith.constant 0 : index
    %c0_18 = arith.constant 0 : index
    %21 = vector.load %arg10[%c0_17, %c0_18] : memref<128x1xf32, #tpu.memory_space<vmem>>, vector<128x1xf32>
    tpu.vector_store %arg10[%c0_17, %c0_18], %20 {strides = array<i32>} : memref<128x1xf32, #tpu.memory_space<vmem>>, vector<128x1xf32>,
    %c0_i32_19 = arith.constant 0 : i32
    %22 = arith.cmpi eq, %arg1, %c0_i32_19 : i32
    %23 = arith.extui %22 : i1 to i32
    %c0_i32_20 = arith.constant 0 : i32
    %24 = arith.cmpi ne, %23, %c0_i32_20 : i32
    scf.if %24 {
      %c0_21 = arith.constant 0 : index
      %c0_22 = arith.constant 0 : index
      %25 = vector.load %arg10[%c0_21, %c0_22] : memref<128x1xf32, #tpu.memory_space<vmem>>, vector<128x1xf32>
      %26 = arith.negf %25 : vector<128x1xf32>
      %27 = math.exp %26 : vector<128x1xf32>
      %cst_23 = arith.constant 1.000000e+00 : f32
      %28 = vector.broadcast %cst_23 : f32 to vector<128x1xf32>
      %29 = arith.addf %28, %27 : vector<128x1xf32>
      %30 = arith.divf %28, %29 : vector<128x1xf32>
      %31 = tpu.iota {dimensions = array<i32: 1>} : vector<128x2xi32>
      %c0_i32_24 = arith.constant 0 : i32
      %32 = vector.broadcast %c0_i32_24 : i32 to vector<128x2xi32>
      %33 = arith.cmpi eq, %31, %32 : vector<128x2xi32>
      %cst_25 = arith.constant 1.000000e+00 : f32
      %34 = vector.broadcast %cst_25 : f32 to vector<128x1xf32>
      %35 = arith.subf %34, %30 : vector<128x1xf32>
      %36 = vector.shape_cast %35 : vector<128x1xf32> to vector<128x1xf32>
      %37 = vector.broadcast %36 : vector<128x1xf32> to vector<128x2xf32>
      %38 = vector.shape_cast %30 : vector<128x1xf32> to vector<128x1xf32>
      %39 = vector.broadcast %38 : vector<128x1xf32> to vector<128x2xf32>
      %40 = arith.select %33, %37, %39 : vector<128x2xi1>, vector<128x2xf32>
      %c0_26 = arith.constant 0 : index
      %c0_27 = arith.constant 0 : index
      %41 = vector.load %arg7[%c0_26, %c0_27] : memref<128x2xf32, #tpu.memory_space<vmem>>, vector<128x2xf32>
      tpu.vector_store %arg7[%c0_26, %c0_27], %40 {strides = array<i32>} : memref<128x2xf32, #tpu.memory_space<vmem>>, vector<128x2xf32>,
    } else {
    }
    return
  }
  func.func @transform_0(%arg0: i32, %arg1: i32) -> (i32, i32) {
    %c0_i32 = arith.constant 0 : i32
    %c0_i32_0 = arith.constant 0 : i32
    return %arg0, %c0_i32 : i32, i32
  }
  func.func @transform_1(%arg0: i32, %arg1: i32) -> (i32, i32) {
    %c0_i32 = arith.constant 0 : i32
    %c0_i32_0 = arith.constant 0 : i32
    return %arg1, %c0_i32 : i32, i32
  }
  func.func @transform_2(%arg0: i32, %arg1: i32) -> (i32, i32) {
    %c0_i32 = arith.constant 0 : i32
    %c0_i32_0 = arith.constant 0 : i32
    %c0_i32_1 = arith.constant 0 : i32
    return %c0_i32, %c0_i32_0 : i32, i32
  }
  func.func @transform_3(%arg0: i32, %arg1: i32) -> (i32, i32) {
    %c0_i32 = arith.constant 0 : i32
    %c0_i32_0 = arith.constant 0 : i32
    return %arg1, %c0_i32 : i32, i32
  }
  func.func @transform_4(%arg0: i32, %arg1: i32) -> (i32, i32) {
    %c0_i32 = arith.constant 0 : i32
    %c0_i32_0 = arith.constant 0 : i32
    return %arg1, %c0_i32 : i32, i32
  }
  func.func @transform_5(%arg0: i32, %arg1: i32) -> (i32, i32) {
    %c0_i32 = arith.constant 0 : i32
    %c0_i32_0 = arith.constant 0 : i32
    return %arg0, %c0_i32 : i32, i32
  }
  func.func @transform_6(%arg0: i32, %arg1: i32) -> (i32, i32) {
    %c0_i32 = arith.constant 0 : i32
    return %arg0, %arg1 : i32, i32
  }
}

</mosaic_0001>

<llo_original>
// kernel: tpu_custom_call.1
$region0: #{tpu_custom_call.1}
  #allocation0 [shape = 'u32[]', space=smem, size = 0x4, offset = 0x4, fixed_abs, tag = 'smem constant byte address 0x4 - core index']
  #allocation1 [shape = 'u32[72,128]{1,0:T(1,128)}', space=vmem, size = 0x9000, scoped, tag = 'internal scratch']
  #allocation2 [shape = 'f32[128,32]{1,0:T(8,128)}', space=vmem, size = 0x10000, scoped, tag = 'scratch operand']
  #allocation3 [shape = 'f32[128,1]{1,0:T(8,128)}', space=vmem, size = 0x10000, scoped, tag = 'scratch operand']
  %s0 = inlined_call_operand.vmem [shape: f32[128,32], index: 0, kind: input, shape index: {}]
  %s1 = inlined_call_operand.vmem [shape: f32[128,32], index: 1, kind: input, shape index: {}]
  %s2 = inlined_call_operand.vmem [shape: f32[1,32], index: 2, kind: input, shape index: {}]
  %s3 = inlined_call_operand.vmem [shape: f32[128,1], index: 3, kind: input, shape index: {}]
  %s4 = inlined_call_operand.vmem [shape: f32[128,1], index: 4, kind: input, shape index: {}]
  %s5 = inlined_call_operand.vmem [shape: f32[128,2], index: 5, kind: output, shape index: {0}]
  %s6 = inlined_call_operand.hbm [shape: f32[128,128], index: 6, kind: output, shape index: {1}]
  %7 = xla_tuple %s5, %s6
  %s8 = sld [smem:[#allocation0]]
  $region46: #{tpu_custom_call.1} parent=0
    _
  %s10 = ssub.s32 1, %s8
  %s11 = scalar_select 0, %s10, %s8
  $region1: #{tpu_custom_call.1} parent=0
    #allocation4 [shape = 'u8[65536]{0}', space=vmem, size = 0x10000, scoped, tag = 'output window, operand 1, single buffered']
    #allocation5 [shape = 's32[1]{0}', space=sflag, size = 0x4, scoped, tag = 'scoped memory for tpu_custom_call.1']
    %12 = vsyncpa [#allocation5], 0
    // Predicated region
    $region2: #{tpu_custom_call.1} parent=1 // pred_check
      _
    $region3: #{tpu_custom_call.1} parent=1 // pred_check_branch
      %14 = sbr.rel (0) target = $region5
    $region4: #{tpu_custom_call.1} parent=1 // pred_region
      _
    $region5: #{tpu_custom_call.1} parent=1 // pred_fallthru
      _
    // Predicated region
    $region6: #{tpu_custom_call.1} parent=1 // pred_check
      _
    $region7: #{tpu_custom_call.1} parent=1 // pred_check_branch
      %16 = sbr.rel (0) target = $region9
    $region8: #{tpu_custom_call.1} parent=1 // pred_region
      _
    $region9: #{tpu_custom_call.1} parent=1 // pred_fallthru
      _
    // Predicated region
    $region10: #{tpu_custom_call.1} parent=1 // pred_check
      _
    $region11: #{tpu_custom_call.1} parent=1 // pred_check_branch
      %18 = sbr.rel (0) target = $region13
    $region12: #{tpu_custom_call.1} parent=1 // pred_region
      _
    $region13: #{tpu_custom_call.1} parent=1 // pred_fallthru
      _
    // Predicated region
    $region14: #{tpu_custom_call.1} parent=1 // pred_check
      _
    $region15: #{tpu_custom_call.1} parent=1 // pred_check_branch
      %20 = sbr.rel (0) target = $region17
    $region16: #{tpu_custom_call.1} parent=1 // pred_region
      _
    $region17: #{tpu_custom_call.1} parent=1 // pred_fallthru
      _
    // Predicated region
    $region18: #{tpu_custom_call.1} parent=1 // pred_check
      _
    $region19: #{tpu_custom_call.1} parent=1 // pred_check_branch
      %22 = sbr.rel (0) target = $region21
    $region20: #{tpu_custom_call.1} parent=1 // pred_region
      _
    $region21: #{tpu_custom_call.1} parent=1 // pred_fallthru
      _
    %p23 = scmp.eq.s32.totalorder 0, 0
    // Predicated region
    $region22: #{tpu_custom_call.1} parent=1 // pred_check
      %p24 = pneg %p23
    $region23: #{tpu_custom_call.1} parent=1 // pred_check_branch
      %26 = sbr.rel (%p24) target = $region25
    $region24: #{tpu_custom_call.1} parent=1 // pred_region
      %v27 = vld [vmem:[%s0] sm:$0xff]
      %v28 = vld [vmem:[%s0 + $0x8] sm:$0xff]
      %v29 = vld [vmem:[%s0 + $0x10] sm:$0xff]
      %v30 = vld [vmem:[%s0 + $0x18] sm:$0xff]
      %v31 = vld [vmem:[%s0 + $0x20] sm:$0xff]
      %v32 = vld [vmem:[%s0 + $0x28] sm:$0xff]
      %v33 = vld [vmem:[%s0 + $0x30] sm:$0xff]
      %v34 = vld [vmem:[%s0 + $0x38] sm:$0xff]
      %v35 = vld [vmem:[%s0 + $0x40] sm:$0xff]
      %v36 = vld [vmem:[%s0 + $0x48] sm:$0xff]
      %v37 = vld [vmem:[%s0 + $0x50] sm:$0xff]
      %v38 = vld [vmem:[%s0 + $0x58] sm:$0xff]
      %v39 = vld [vmem:[%s0 + $0x60] sm:$0xff]
      %v40 = vld [vmem:[%s0 + $0x68] sm:$0xff]
      %v41 = vld [vmem:[%s0 + $0x70] sm:$0xff]
      %v42 = vld [vmem:[%s0 + $0x78] sm:$0xff]
      %v43 = vld [vmem:[%s2] sm:$0x1]
      %v45 = vperm.slane %v43, 0
      %v47 = vmul.f32 %v27, %v45
      %v48 = vmul.f32 %v28, %v45
      %v49 = vmul.f32 %v29, %v45
      %v50 = vmul.f32 %v30, %v45
      %v51 = vmul.f32 %v31, %v45
      %v52 = vmul.f32 %v32, %v45
      %v53 = vmul.f32 %v33, %v45
      %v54 = vmul.f32 %v34, %v45
      %v55 = vmul.f32 %v35, %v45
      %v56 = vmul.f32 %v36, %v45
      %v57 = vmul.f32 %v37, %v45
      %v58 = vmul.f32 %v38, %v45
      %v59 = vmul.f32 %v39, %v45
      %v60 = vmul.f32 %v40, %v45
      %v61 = vmul.f32 %v41, %v45
      %v62 = vmul.f32 %v42, %v45
      %vm63 = vcmask 261120
      %64 = vst.msk [vmem:[#allocation2] sm:$0xff] %vm63, %v47
      %65 = vst.msk [vmem:[#allocation2 + $0x8] sm:$0xff] %vm63, %v48
      %66 = vst.msk [vmem:[#allocation2 + $0x10] sm:$0xff] %vm63, %v49
      %67 = vst.msk [vmem:[#allocation2 + $0x18] sm:$0xff] %vm63, %v50
      %68 = vst.msk [vmem:[#allocation2 + $0x20] sm:$0xff] %vm63, %v51
      %69 = vst.msk [vmem:[#allocation2 + $0x28] sm:$0xff] %vm63, %v52
      %70 = vst.msk [vmem:[#allocation2 + $0x30] sm:$0xff] %vm63, %v53
      %71 = vst.msk [vmem:[#allocation2 + $0x38] sm:$0xff] %vm63, %v54
      %72 = vst.msk [vmem:[#allocation2 + $0x40] sm:$0xff] %vm63, %v55
      %73 = vst.msk [vmem:[#allocation2 + $0x48] sm:$0xff] %vm63, %v56
      %74 = vst.msk [vmem:[#allocation2 + $0x50] sm:$0xff] %vm63, %v57
      %75 = vst.msk [vmem:[#allocation2 + $0x58] sm:$0xff] %vm63, %v58
      %76 = vst.msk [vmem:[#allocation2 + $0x60] sm:$0xff] %vm63, %v59
      %77 = vst.msk [vmem:[#allocation2 + $0x68] sm:$0xff] %vm63, %v60
      %78 = vst.msk [vmem:[#allocation2 + $0x70] sm:$0xff] %vm63, %v61
      %79 = vst.msk [vmem:[#allocation2 + $0x78] sm:$0xff] %vm63, %v62
      %vm80 = vcmask 7168
      %81 = vst.msk [vmem:[#allocation3] sm:$0xff] %vm80, 0.0
      %82 = vst.msk [vmem:[#allocation3 + $0x8] sm:$0xff] %vm80, 0.0
      %83 = vst.msk [vmem:[#allocation3 + $0x10] sm:$0xff] %vm80, 0.0
      %84 = vst.msk [vmem:[#allocation3 + $0x18] sm:$0xff] %vm80, 0.0
      %85 = vst.msk [vmem:[#allocation3 + $0x20] sm:$0xff] %vm80, 0.0
      %86 = vst.msk [vmem:[#allocation3 + $0x28] sm:$0xff] %vm80, 0.0
      %87 = vst.msk [vmem:[#allocation3 + $0x30] sm:$0xff] %vm80, 0.0
      %88 = vst.msk [vmem:[#allocation3 + $0x38] sm:$0xff] %vm80, 0.0
      %89 = vst.msk [vmem:[#allocation3 + $0x40] sm:$0xff] %vm80, 0.0
      %90 = vst.msk [vmem:[#allocation3 + $0x48] sm:$0xff] %vm80, 0.0
      %91 = vst.msk [vmem:[#allocation3 + $0x50] sm:$0xff] %vm80, 0.0
      %92 = vst.msk [vmem:[#allocation3 + $0x58] sm:$0xff] %vm80, 0.0
      %93 = vst.msk [vmem:[#allocation3 + $0x60] sm:$0xff] %vm80, 0.0
      %94 = vst.msk [vmem:[#allocation3 + $0x68] sm:$0xff] %vm80, 0.0
      %95 = vst.msk [vmem:[#allocation3 + $0x70] sm:$0xff] %vm80, 0.0
      %96 = vst.msk [vmem:[#allocation3 + $0x78] sm:$0xff] %vm80, 0.0
    $region25: #{tpu_custom_call.1} parent=1 // pred_fallthru
      _
    %v97 = vld [vmem:[%s1] sm:$0xff]
    %v98 = vld [vmem:[%s1 + $0x8] sm:$0xff]
    %v99 = vld [vmem:[%s1 + $0x10] sm:$0xff]
    %v100 = vld [vmem:[%s1 + $0x18] sm:$0xff]
    %v101 = vld [vmem:[%s1 + $0x20] sm:$0xff]
    %v102 = vld [vmem:[%s1 + $0x28] sm:$0xff]
    %v103 = vld [vmem:[%s1 + $0x30] sm:$0xff]
    %v104 = vld [vmem:[%s1 + $0x38] sm:$0xff]
    %v105 = vld [vmem:[%s1 + $0x40] sm:$0xff]
    %v106 = vld [vmem:[%s1 + $0x48] sm:$0xff]
    %v107 = vld [vmem:[%s1 + $0x50] sm:$0xff]
    %v108 = vld [vmem:[%s1 + $0x58] sm:$0xff]
    %v109 = vld [vmem:[%s1 + $0x60] sm:$0xff]
    %v110 = vld [vmem:[%s1 + $0x68] sm:$0xff]
    %v111 = vld [vmem:[%s1 + $0x70] sm:$0xff]
    %v112 = vld [vmem:[%s1 + $0x78] sm:$0xff]
    %v113 = vld [vmem:[%s2] sm:$0x1]
    %v115 = vperm.slane %v113, 0
    %v117 = vmul.f32 %v97, %v115
    %v118 = vmul.f32 %v98, %v115
    %v119 = vmul.f32 %v99, %v115
    %v120 = vmul.f32 %v100, %v115
    %v121 = vmul.f32 %v101, %v115
    %v122 = vmul.f32 %v102, %v115
    %v123 = vmul.f32 %v103, %v115
    %v124 = vmul.f32 %v104, %v115
    %v125 = vmul.f32 %v105, %v115
    %v126 = vmul.f32 %v106, %v115
    %v127 = vmul.f32 %v107, %v115
    %v128 = vmul.f32 %v108, %v115
    %v129 = vmul.f32 %v109, %v115
    %v130 = vmul.f32 %v110, %v115
    %v131 = vmul.f32 %v111, %v115
    %v132 = vmul.f32 %v112, %v115
    %v133 = vld [vmem:[%s3] sm:$0xff]
    %v134 = vld [vmem:[%s3 + $0x8] sm:$0xff]
    %v135 = vld [vmem:[%s3 + $0x10] sm:$0xff]
    %v136 = vld [vmem:[%s3 + $0x18] sm:$0xff]
    %v137 = vld [vmem:[%s3 + $0x20] sm:$0xff]
    %v138 = vld [vmem:[%s3 + $0x28] sm:$0xff]
    %v139 = vld [vmem:[%s3 + $0x30] sm:$0xff]
    %v140 = vld [vmem:[%s3 + $0x38] sm:$0xff]
    %v141 = vld [vmem:[%s3 + $0x40] sm:$0xff]
    %v142 = vld [vmem:[%s3 + $0x48] sm:$0xff]
    %v143 = vld [vmem:[%s3 + $0x50] sm:$0xff]
    %v144 = vld [vmem:[%s3 + $0x58] sm:$0xff]
    %v145 = vld [vmem:[%s3 + $0x60] sm:$0xff]
    %v146 = vld [vmem:[%s3 + $0x68] sm:$0xff]
    %v147 = vld [vmem:[%s3 + $0x70] sm:$0xff]
    %v148 = vld [vmem:[%s3 + $0x78] sm:$0xff]
    %150 = vset.pattern.permute.xlu0 0
    %151 = vperm.xlu0 %150, %v133
    %v152 = vpop.permute.xlu0 %151
    %155 = vset.pattern.permute.xlu0 0
    %156 = vperm.xlu0 %155, %v134
    %v157 = vpop.permute.xlu0 %156
    %160 = vset.pattern.permute.xlu0 0
    %161 = vperm.xlu0 %160, %v135
    %v162 = vpop.permute.xlu0 %161
    %165 = vset.pattern.permute.xlu0 0
    %166 = vperm.xlu0 %165, %v136
    %v167 = vpop.permute.xlu0 %166
    %170 = vset.pattern.permute.xlu0 0
    %171 = vperm.xlu0 %170, %v137
    %v172 = vpop.permute.xlu0 %171
    %175 = vset.pattern.permute.xlu0 0
    %176 = vperm.xlu0 %175, %v138
    %v177 = vpop.permute.xlu0 %176
    %180 = vset.pattern.permute.xlu0 0
    %181 = vperm.xlu0 %180, %v139
    %v182 = vpop.permute.xlu0 %181
    %185 = vset.pattern.permute.xlu0 0
    %186 = vperm.xlu0 %185, %v140
    %v187 = vpop.permute.xlu0 %186
    %190 = vset.pattern.permute.xlu0 0
    %191 = vperm.xlu0 %190, %v141
    %v192 = vpop.permute.xlu0 %191
    %195 = vset.pattern.permute.xlu0 0
    %196 = vperm.xlu0 %195, %v142
    %v197 = vpop.permute.xlu0 %196
    %200 = vset.pattern.permute.xlu0 0
    %201 = vperm.xlu0 %200, %v143
    %v202 = vpop.permute.xlu0 %201
    %205 = vset.pattern.permute.xlu0 0
    %206 = vperm.xlu0 %205, %v144
    %v207 = vpop.permute.xlu0 %206
    %210 = vset.pattern.permute.xlu0 0
    %211 = vperm.xlu0 %210, %v145
    %v212 = vpop.permute.xlu0 %211
    %215 = vset.pattern.permute.xlu0 0
    %216 = vperm.xlu0 %215, %v146
    %v217 = vpop.permute.xlu0 %216
    %220 = vset.pattern.permute.xlu0 0
    %221 = vperm.xlu0 %220, %v147
    %v222 = vpop.permute.xlu0 %221
    %225 = vset.pattern.permute.xlu0 0
    %226 = vperm.xlu0 %225, %v148
    %v227 = vpop.permute.xlu0 %226
    %v229 = vmul.f32 %v117, %v152
    %v230 = vmul.f32 %v118, %v157
    %v231 = vmul.f32 %v119, %v162
    %v232 = vmul.f32 %v120, %v167
    %v233 = vmul.f32 %v121, %v172
    %v234 = vmul.f32 %v122, %v177
    %v235 = vmul.f32 %v123, %v182
    %v236 = vmul.f32 %v124, %v187
    %v237 = vmul.f32 %v125, %v192
    %v238 = vmul.f32 %v126, %v197
    %v239 = vmul.f32 %v127, %v202
    %v240 = vmul.f32 %v128, %v207
    %v241 = vmul.f32 %v129, %v212
    %v242 = vmul.f32 %v130, %v217
    %v243 = vmul.f32 %v131, %v222
    %v244 = vmul.f32 %v132, %v227
    %v245 = vld [vmem:[#allocation2] sm:$0xff]
    %v246 = vld [vmem:[#allocation2 + $0x8] sm:$0xff]
    %v247 = vld [vmem:[#allocation2 + $0x10] sm:$0xff]
    %v248 = vld [vmem:[#allocation2 + $0x18] sm:$0xff]
    %v249 = vld [vmem:[#allocation2 + $0x20] sm:$0xff]
    %v250 = vld [vmem:[#allocation2 + $0x28] sm:$0xff]
    %v251 = vld [vmem:[#allocation2 + $0x30] sm:$0xff]
    %v252 = vld [vmem:[#allocation2 + $0x38] sm:$0xff]
    %v253 = vld [vmem:[#allocation2 + $0x40] sm:$0xff]
    %v254 = vld [vmem:[#allocation2 + $0x48] sm:$0xff]
    %v255 = vld [vmem:[#allocation2 + $0x50] sm:$0xff]
    %v256 = vld [vmem:[#allocation2 + $0x58] sm:$0xff]
    %v257 = vld [vmem:[#allocation2 + $0x60] sm:$0xff]
    %v258 = vld [vmem:[#allocation2 + $0x68] sm:$0xff]
    %v259 = vld [vmem:[#allocation2 + $0x70] sm:$0xff]
    %v260 = vld [vmem:[#allocation2 + $0x78] sm:$0xff]
    %vm261 = vcmask 261120
    %v263 = vsel %vm261, %v245, 0
    %v266 = vsel %vm261, %v246, 0
    %v269 = vsel %vm261, %v247, 0
    %v272 = vsel %vm261, %v248, 0
    %v275 = vsel %vm261, %v249, 0
    %v278 = vsel %vm261, %v250, 0
    %v281 = vsel %vm261, %v251, 0
    %v284 = vsel %vm261, %v252, 0
    %v287 = vsel %vm261, %v253, 0
    %v290 = vsel %vm261, %v254, 0
    %v293 = vsel %vm261, %v255, 0
    %v296 = vsel %vm261, %v256, 0
    %v299 = vsel %vm261, %v257, 0
    %v302 = vsel %vm261, %v258, 0
    %v305 = vsel %vm261, %v259, 0
    %v308 = vsel %vm261, %v260, 0
    %v311 = vsel %vm261, %v229, 0
    %v314 = vsel %vm261, %v230, 0
    %v317 = vsel %vm261, %v231, 0
    %v320 = vsel %vm261, %v232, 0
    %v323 = vsel %vm261, %v233, 0
    %v326 = vsel %vm261, %v234, 0
    %v329 = vsel %vm261, %v235, 0
    %v332 = vsel %vm261, %v236, 0
    %v335 = vsel %vm261, %v237, 0
    %v338 = vsel %vm261, %v238, 0
    %v341 = vsel %vm261, %v239, 0
    %v344 = vsel %vm261, %v240, 0
    %v347 = vsel %vm261, %v241, 0
    %v350 = vsel %vm261, %v242, 0
    %v353 = vsel %vm261, %v243, 0
    %v356 = vsel %vm261, %v244, 0
    %358 = vmatpush.xpose.msra.mxu0 %v356
    %359 = vmatpush.xpose.msra.mxu0 %v353
    %360 = vmatpush.xpose.msra.mxu0 %v350
    %361 = vmatpush.xpose.msra.mxu0 %v347
    %362 = vmatpush.xpose.msra.mxu0 %v344
    %363 = vmatpush.xpose.msra.mxu0 %v341
    %364 = vmatpush.xpose.msra.mxu0 %v338
    %365 = vmatpush.xpose.msra.mxu0 %v335
    %366 = vmatpush.xpose.msra.mxu0 %v332
    %367 = vmatpush.xpose.msra.mxu0 %v329
    %368 = vmatpush.xpose.msra.mxu0 %v326
    %369 = vmatpush.xpose.msra.mxu0 %v323
    %370 = vmatpush.xpose.msra.mxu0 %v320
    %371 = vmatpush.xpose.msra.mxu0 %v317
    %372 = vmatpush.xpose.msra.mxu0 %v314
    %373 = vmatpush.xpose.msra.mxu0 %v311
    %374 = vmatmul.f32.gmra.mxu0 %v263
    %v375 = vpop.f32.mrf.mxu0
    %v376 = vadd.f32 0.0, %v375
    %377 = vmatmul.f32.gmra.mxu0 %v266
    %v378 = vpop.f32.mrf.mxu0
    %v379 = vadd.f32 0.0, %v378
    %380 = vmatmul.f32.gmra.mxu0 %v269
    %v381 = vpop.f32.mrf.mxu0
    %v382 = vadd.f32 0.0, %v381
    %383 = vmatmul.f32.gmra.mxu0 %v272
    %v384 = vpop.f32.mrf.mxu0
    %v385 = vadd.f32 0.0, %v384
    %386 = vmatmul.f32.gmra.mxu0 %v275
    %v387 = vpop.f32.mrf.mxu0
    %v388 = vadd.f32 0.0, %v387
    %389 = vmatmul.f32.gmra.mxu0 %v278
    %v390 = vpop.f32.mrf.mxu0
    %v391 = vadd.f32 0.0, %v390
    %392 = vmatmul.f32.gmra.mxu0 %v281
    %v393 = vpop.f32.mrf.mxu0
    %v394 = vadd.f32 0.0, %v393
    %395 = vmatmul.f32.gmra.mxu0 %v284
    %v396 = vpop.f32.mrf.mxu0
    %v397 = vadd.f32 0.0, %v396
    %398 = vmatmul.f32.gmra.mxu0 %v287
    %v399 = vpop.f32.mrf.mxu0
    %v400 = vadd.f32 0.0, %v399
    %401 = vmatmul.f32.gmra.mxu0 %v290
    %v402 = vpop.f32.mrf.mxu0
    %v403 = vadd.f32 0.0, %v402
    %404 = vmatmul.f32.gmra.mxu0 %v293
    %v405 = vpop.f32.mrf.mxu0
    %v406 = vadd.f32 0.0, %v405
    %407 = vmatmul.f32.gmra.mxu0 %v296
    %v408 = vpop.f32.mrf.mxu0
    %v409 = vadd.f32 0.0, %v408
    %410 = vmatmul.f32.gmra.mxu0 %v299
    %v411 = vpop.f32.mrf.mxu0
    %v412 = vadd.f32 0.0, %v411
    %413 = vmatmul.f32.gmra.mxu0 %v302
    %v414 = vpop.f32.mrf.mxu0
    %v415 = vadd.f32 0.0, %v414
    %416 = vmatmul.f32.gmra.mxu0 %v305
    %v417 = vpop.f32.mrf.mxu0
    %v418 = vadd.f32 0.0, %v417
    %419 = vmatmul.f32.gmra.mxu0 %v308
    %v420 = vpop.f32.mrf.mxu0
    %v421 = vadd.f32 0.0, %v420
    %422 = vdwg.mxu0
    %423 = vst [vmem:[#allocation4] sm:$0xff] %v376
    %424 = vst [vmem:[#allocation4 + $0x8] sm:$0xff] %v379
    %425 = vst [vmem:[#allocation4 + $0x10] sm:$0xff] %v382
    %426 = vst [vmem:[#allocation4 + $0x18] sm:$0xff] %v385
    %427 = vst [vmem:[#allocation4 + $0x20] sm:$0xff] %v388
    %428 = vst [vmem:[#allocation4 + $0x28] sm:$0xff] %v391
    %429 = vst [vmem:[#allocation4 + $0x30] sm:$0xff] %v394
    %430 = vst [vmem:[#allocation4 + $0x38] sm:$0xff] %v397
    %431 = vst [vmem:[#allocation4 + $0x40] sm:$0xff] %v400
    %432 = vst [vmem:[#allocation4 + $0x48] sm:$0xff] %v403
    %433 = vst [vmem:[#allocation4 + $0x50] sm:$0xff] %v406
    %434 = vst [vmem:[#allocation4 + $0x58] sm:$0xff] %v409
    %435 = vst [vmem:[#allocation4 + $0x60] sm:$0xff] %v412
    %436 = vst [vmem:[#allocation4 + $0x68] sm:$0xff] %v415
    %437 = vst [vmem:[#allocation4 + $0x70] sm:$0xff] %v418
    %438 = vst [vmem:[#allocation4 + $0x78] sm:$0xff] %v421
    %v439 = vld [vmem:[%s4] sm:$0xff]
    %v440 = vld [vmem:[%s4 + $0x8] sm:$0xff]
    %v441 = vld [vmem:[%s4 + $0x10] sm:$0xff]
    %v442 = vld [vmem:[%s4 + $0x18] sm:$0xff]
    %v443 = vld [vmem:[%s4 + $0x20] sm:$0xff]
    %v444 = vld [vmem:[%s4 + $0x28] sm:$0xff]
    %v445 = vld [vmem:[%s4 + $0x30] sm:$0xff]
    %v446 = vld [vmem:[%s4 + $0x38] sm:$0xff]
    %v447 = vld [vmem:[%s4 + $0x40] sm:$0xff]
    %v448 = vld [vmem:[%s4 + $0x48] sm:$0xff]
    %v449 = vld [vmem:[%s4 + $0x50] sm:$0xff]
    %v450 = vld [vmem:[%s4 + $0x58] sm:$0xff]
    %v451 = vld [vmem:[%s4 + $0x60] sm:$0xff]
    %v452 = vld [vmem:[%s4 + $0x68] sm:$0xff]
    %v453 = vld [vmem:[%s4 + $0x70] sm:$0xff]
    %v454 = vld [vmem:[%s4 + $0x78] sm:$0xff]
    %v455 = vmul.f32 %v439, 2.0
    %v456 = vmul.f32 %v440, 2.0
    %v457 = vmul.f32 %v441, 2.0
    %v458 = vmul.f32 %v442, 2.0
    %v459 = vmul.f32 %v443, 2.0
    %v460 = vmul.f32 %v444, 2.0
    %v461 = vmul.f32 %v445, 2.0
    %v462 = vmul.f32 %v446, 2.0
    %v463 = vmul.f32 %v447, 2.0
    %v464 = vmul.f32 %v448, 2.0
    %v465 = vmul.f32 %v449, 2.0
    %v466 = vmul.f32 %v450, 2.0
    %v467 = vmul.f32 %v451, 2.0
    %v468 = vmul.f32 %v452, 2.0
    %v469 = vmul.f32 %v453, 2.0
    %v470 = vmul.f32 %v454, 2.0
    %v471 = vsub.f32 %v455, 1.0
    %v472 = vsub.f32 %v456, 1.0
    %v473 = vsub.f32 %v457, 1.0
    %v474 = vsub.f32 %v458, 1.0
    %v475 = vsub.f32 %v459, 1.0
    %v476 = vsub.f32 %v460, 1.0
    %v477 = vsub.f32 %v461, 1.0
    %v478 = vsub.f32 %v462, 1.0
    %v479 = vsub.f32 %v463, 1.0
    %v480 = vsub.f32 %v464, 1.0
    %v481 = vsub.f32 %v465, 1.0
    %v482 = vsub.f32 %v466, 1.0
    %v483 = vsub.f32 %v467, 1.0
    %v484 = vsub.f32 %v468, 1.0
    %v485 = vsub.f32 %v469, 1.0
    %v486 = vsub.f32 %v470, 1.0
    %v487 = vld [vmem:[#allocation3] sm:$0xff]
    %v488 = vld [vmem:[#allocation3 + $0x8] sm:$0xff]
    %v489 = vld [vmem:[#allocation3 + $0x10] sm:$0xff]
    %v490 = vld [vmem:[#allocation3 + $0x18] sm:$0xff]
    %v491 = vld [vmem:[#allocation3 + $0x20] sm:$0xff]
    %v492 = vld [vmem:[#allocation3 + $0x28] sm:$0xff]
    %v493 = vld [vmem:[#allocation3 + $0x30] sm:$0xff]
    %v494 = vld [vmem:[#allocation3 + $0x38] sm:$0xff]
    %v495 = vld [vmem:[#allocation3 + $0x40] sm:$0xff]
    %v496 = vld [vmem:[#allocation3 + $0x48] sm:$0xff]
    %v497 = vld [vmem:[#allocation3 + $0x50] sm:$0xff]
    %v498 = vld [vmem:[#allocation3 + $0x58] sm:$0xff]
    %v499 = vld [vmem:[#allocation3 + $0x60] sm:$0xff]
    %v500 = vld [vmem:[#allocation3 + $0x68] sm:$0xff]
    %v501 = vld [vmem:[#allocation3 + $0x70] sm:$0xff]
    %v502 = vld [vmem:[#allocation3 + $0x78] sm:$0xff]
    %503 = vmatpush.msra.mxu0 %v486
    %504 = vmatpush.msra.mxu0 %v485
    %505 = vmatpush.msra.mxu0 %v484
    %506 = vmatpush.msra.mxu0 %v483
    %507 = vmatpush.msra.mxu0 %v482
    %508 = vmatpush.msra.mxu0 %v481
    %509 = vmatpush.msra.mxu0 %v480
    %510 = vmatpush.msra.mxu0 %v479
    %511 = vmatpush.msra.mxu0 %v478
    %512 = vmatpush.msra.mxu0 %v477
    %513 = vmatpush.msra.mxu0 %v476
    %514 = vmatpush.msra.mxu0 %v475
    %515 = vmatpush.msra.mxu0 %v474
    %516 = vmatpush.msra.mxu0 %v473
    %517 = vmatpush.msra.mxu0 %v472
    %518 = vmatpush.msra.mxu0 %v471
    %519 = vmatmul.f32.gmra.mxu0 %v376
    %v520 = vpop.f32.mrf.mxu0
    %v521 = vadd.f32 0.0, %v520
    %522 = vmatmul.f32.gmra.mxu0 %v379
    %v523 = vpop.f32.mrf.mxu0
    %v524 = vadd.f32 0.0, %v523
    %525 = vmatmul.f32.gmra.mxu0 %v382
    %v526 = vpop.f32.mrf.mxu0
    %v527 = vadd.f32 0.0, %v526
    %528 = vmatmul.f32.gmra.mxu0 %v385
    %v529 = vpop.f32.mrf.mxu0
    %v530 = vadd.f32 0.0, %v529
    %531 = vmatmul.f32.gmra.mxu0 %v388
    %v532 = vpop.f32.mrf.mxu0
    %v533 = vadd.f32 0.0, %v532
    %534 = vmatmul.f32.gmra.mxu0 %v391
    %v535 = vpop.f32.mrf.mxu0
    %v536 = vadd.f32 0.0, %v535
    %537 = vmatmul.f32.gmra.mxu0 %v394
    %v538 = vpop.f32.mrf.mxu0
    %v539 = vadd.f32 0.0, %v538
    %540 = vmatmul.f32.gmra.mxu0 %v397
    %v541 = vpop.f32.mrf.mxu0
    %v542 = vadd.f32 0.0, %v541
    %543 = vmatmul.f32.gmra.mxu0 %v400
    %v544 = vpop.f32.mrf.mxu0
    %v545 = vadd.f32 0.0, %v544
    %546 = vmatmul.f32.gmra.mxu0 %v403
    %v547 = vpop.f32.mrf.mxu0
    %v548 = vadd.f32 0.0, %v547
    %549 = vmatmul.f32.gmra.mxu0 %v406
    %v550 = vpop.f32.mrf.mxu0
    %v551 = vadd.f32 0.0, %v550
    %552 = vmatmul.f32.gmra.mxu0 %v409
    %v553 = vpop.f32.mrf.mxu0
    %v554 = vadd.f32 0.0, %v553
    %555 = vmatmul.f32.gmra.mxu0 %v412
    %v556 = vpop.f32.mrf.mxu0
    %v557 = vadd.f32 0.0, %v556
    %558 = vmatmul.f32.gmra.mxu0 %v415
    %v559 = vpop.f32.mrf.mxu0
    %v560 = vadd.f32 0.0, %v559
    %561 = vmatmul.f32.gmra.mxu0 %v418
    %v562 = vpop.f32.mrf.mxu0
    %v563 = vadd.f32 0.0, %v562
    %564 = vmatmul.f32.gmra.mxu0 %v421
    %v565 = vpop.f32.mrf.mxu0
    %v566 = vadd.f32 0.0, %v565
    %567 = vdwg.mxu0
    %v568 = vadd.f32 %v487, %v521
    %v569 = vadd.f32 %v488, %v524
    %v570 = vadd.f32 %v489, %v527
    %v571 = vadd.f32 %v490, %v530
    %v572 = vadd.f32 %v491, %v533
    %v573 = vadd.f32 %v492, %v536
    %v574 = vadd.f32 %v493, %v539
    %v575 = vadd.f32 %v494, %v542
    %v576 = vadd.f32 %v495, %v545
    %v577 = vadd.f32 %v496, %v548
    %v578 = vadd.f32 %v497, %v551
    %v579 = vadd.f32 %v498, %v554
    %v580 = vadd.f32 %v499, %v557
    %v581 = vadd.f32 %v500, %v560
    %v582 = vadd.f32 %v501, %v563
    %v583 = vadd.f32 %v502, %v566
    %vm584 = vcmask 7168
    %585 = vst.msk [vmem:[#allocation3] sm:$0xff] %vm584, %v568
    %586 = vst.msk [vmem:[#allocation3 + $0x8] sm:$0xff] %vm584, %v569
    %587 = vst.msk [vmem:[#allocation3 + $0x10] sm:$0xff] %vm584, %v570
    %588 = vst.msk [vmem:[#allocation3 + $0x18] sm:$0xff] %vm584, %v571
    %589 = vst.msk [vmem:[#allocation3 + $0x20] sm:$0xff] %vm584, %v572
    %590 = vst.msk [vmem:[#allocation3 + $0x28] sm:$0xff] %vm584, %v573
    %591 = vst.msk [vmem:[#allocation3 + $0x30] sm:$0xff] %vm584, %v574
    %592 = vst.msk [vmem:[#allocation3 + $0x38] sm:$0xff] %vm584, %v575
    %593 = vst.msk [vmem:[#allocation3 + $0x40] sm:$0xff] %vm584, %v576
    %594 = vst.msk [vmem:[#allocation3 + $0x48] sm:$0xff] %vm584, %v577
    %595 = vst.msk [vmem:[#allocation3 + $0x50] sm:$0xff] %vm584, %v578
    %596 = vst.msk [vmem:[#allocation3 + $0x58] sm:$0xff] %vm584, %v579
    %597 = vst.msk [vmem:[#allocation3 + $0x60] sm:$0xff] %vm584, %v580
    %598 = vst.msk [vmem:[#allocation3 + $0x68] sm:$0xff] %vm584, %v581
    %599 = vst.msk [vmem:[#allocation3 + $0x70] sm:$0xff] %vm584, %v582
    %600 = vst.msk [vmem:[#allocation3 + $0x78] sm:$0xff] %vm584, %v583
    // Predicated region
    $region26: #{tpu_custom_call.1} parent=1 // pred_check
      %p601 = pneg %p23
    $region27: #{tpu_custom_call.1} parent=1 // pred_check_branch
      %603 = sbr.rel (%p601) target = $region29
    $region28: #{tpu_custom_call.1} parent=1 // pred_region
      %v604 = vld [vmem:[#allocation3] sm:$0xff]
      %v605 = vld [vmem:[#allocation3 + $0x8] sm:$0xff]
      %v606 = vld [vmem:[#allocation3 + $0x10] sm:$0xff]
      %v607 = vld [vmem:[#allocation3 + $0x18] sm:$0xff]
      %v608 = vld [vmem:[#allocation3 + $0x20] sm:$0xff]
      %v609 = vld [vmem:[#allocation3 + $0x28] sm:$0xff]
      %v610 = vld [vmem:[#allocation3 + $0x30] sm:$0xff]
      %v611 = vld [vmem:[#allocation3 + $0x38] sm:$0xff]
      %v612 = vld [vmem:[#allocation3 + $0x40] sm:$0xff]
      %v613 = vld [vmem:[#allocation3 + $0x48] sm:$0xff]
      %v614 = vld [vmem:[#allocation3 + $0x50] sm:$0xff]
      %v615 = vld [vmem:[#allocation3 + $0x58] sm:$0xff]
      %v616 = vld [vmem:[#allocation3 + $0x60] sm:$0xff]
      %v617 = vld [vmem:[#allocation3 + $0x68] sm:$0xff]
      %v618 = vld [vmem:[#allocation3 + $0x70] sm:$0xff]
      %v619 = vld [vmem:[#allocation3 + $0x78] sm:$0xff]
      %v620 = vxor.u32 %v604, 2147483648
      %v621 = vxor.u32 %v605, 2147483648
      %v622 = vxor.u32 %v606, 2147483648
      %v623 = vxor.u32 %v607, 2147483648
      %v624 = vxor.u32 %v608, 2147483648
      %v625 = vxor.u32 %v609, 2147483648
      %v626 = vxor.u32 %v610, 2147483648
      %v627 = vxor.u32 %v611, 2147483648
      %v628 = vxor.u32 %v612, 2147483648
      %v629 = vxor.u32 %v613, 2147483648
      %v630 = vxor.u32 %v614, 2147483648
      %v631 = vxor.u32 %v615, 2147483648
      %v632 = vxor.u32 %v616, 2147483648
      %v633 = vxor.u32 %v617, 2147483648
      %v634 = vxor.u32 %v618, 2147483648
      %v635 = vxor.u32 %v619, 2147483648
      %v636 = vmul.f32 %v620, 1.442695
      %v637 = vpow.pop %v636
      %v638 = vmul.f32 %v621, 1.442695
      %v639 = vpow.pop %v638
      %v640 = vmul.f32 %v622, 1.442695
      %v641 = vpow.pop %v640
      %v642 = vmul.f32 %v623, 1.442695
      %v643 = vpow.pop %v642
      %v644 = vmul.f32 %v624, 1.442695
      %v645 = vpow.pop %v644
      %v646 = vmul.f32 %v625, 1.442695
      %v647 = vpow.pop %v646
      %v648 = vmul.f32 %v626, 1.442695
      %v649 = vpow.pop %v648
      %v650 = vmul.f32 %v627, 1.442695
      %v651 = vpow.pop %v650
      %v652 = vmul.f32 %v628, 1.442695
      %v653 = vpow.pop %v652
      %v654 = vmul.f32 %v629, 1.442695
      %v655 = vpow.pop %v654
      %v656 = vmul.f32 %v630, 1.442695
      %v657 = vpow.pop %v656
      %v658 = vmul.f32 %v631, 1.442695
      %v659 = vpow.pop %v658
      %v660 = vmul.f32 %v632, 1.442695
      %v661 = vpow.pop %v660
      %v662 = vmul.f32 %v633, 1.442695
      %v663 = vpow.pop %v662
      %v664 = vmul.f32 %v634, 1.442695
      %v665 = vpow.pop %v664
      %v666 = vmul.f32 %v635, 1.442695
      %v667 = vpow.pop %v666
      %v668 = vadd.f32 %v637, 1.0
      %v669 = vadd.f32 %v639, 1.0
      %v670 = vadd.f32 %v641, 1.0
      %v671 = vadd.f32 %v643, 1.0
      %v672 = vadd.f32 %v645, 1.0
      %v673 = vadd.f32 %v647, 1.0
      %v674 = vadd.f32 %v649, 1.0
      %v675 = vadd.f32 %v651, 1.0
      %v676 = vadd.f32 %v653, 1.0
      %v677 = vadd.f32 %v655, 1.0
      %v678 = vadd.f32 %v657, 1.0
      %v679 = vadd.f32 %v659, 1.0
      %v680 = vadd.f32 %v661, 1.0
      %v681 = vadd.f32 %v663, 1.0
      %v682 = vadd.f32 %v665, 1.0
      %v683 = vadd.f32 %v667, 1.0
      %v684 = vrcp.pop %v668
      %v685 = vmul.f32 %v668, %v684
      %v686 = vsub.f32 1.0, %v685
      %v687 = vmul.f32 %v684, %v686
      %v688 = vadd.f32 %v684, %v687
      %vm689 = vweird.f32 %v668
      %vm690 = vweird.f32 %v684
      %vm691 = vmor %vm689, %vm690
      %v692 = vsel %vm691, %v684, %v688
      %v693 = vand.u32 2147483647, %v668
      %vm694 = vcmp.eq.f32.partialorder %v693, 8.507059e+37
      %v695 = vand.u32 %v668, 2147483648
      %v696 = vor.u32 1.1754944e-38, %v695
      %v697 = vsel %vm694, %v696, %v692
      %v698 = vmul.f32 1.0, %v697
      %v699 = vrcp.pop %v669
      %v700 = vmul.f32 %v669, %v699
      %v701 = vsub.f32 1.0, %v700
      %v702 = vmul.f32 %v699, %v701
      %v703 = vadd.f32 %v699, %v702
      %vm704 = vweird.f32 %v669
      %vm705 = vweird.f32 %v699
      %vm706 = vmor %vm704, %vm705
      %v707 = vsel %vm706, %v699, %v703
      %v708 = vand.u32 2147483647, %v669
      %vm709 = vcmp.eq.f32.partialorder %v708, 8.507059e+37
      %v710 = vand.u32 %v669, 2147483648
      %v711 = vor.u32 1.1754944e-38, %v710
      %v712 = vsel %vm709, %v711, %v707
      %v713 = vmul.f32 1.0, %v712
      %v714 = vrcp.pop %v670
      %v715 = vmul.f32 %v670, %v714
      %v716 = vsub.f32 1.0, %v715
      %v717 = vmul.f32 %v714, %v716
      %v718 = vadd.f32 %v714, %v717
      %vm719 = vweird.f32 %v670
      %vm720 = vweird.f32 %v714
      %vm721 = vmor %vm719, %vm720
      %v722 = vsel %vm721, %v714, %v718
      %v723 = vand.u32 2147483647, %v670
      %vm724 = vcmp.eq.f32.partialorder %v723, 8.507059e+37
      %v725 = vand.u32 %v670, 2147483648
      %v726 = vor.u32 1.1754944e-38, %v725
      %v727 = vsel %vm724, %v726, %v722
      %v728 = vmul.f32 1.0, %v727
      %v729 = vrcp.pop %v671
      %v730 = vmul.f32 %v671, %v729
      %v731 = vsub.f32 1.0, %v730
      %v732 = vmul.f32 %v729, %v731
      %v733 = vadd.f32 %v729, %v732
      %vm734 = vweird.f32 %v671
      %vm735 = vweird.f32 %v729
      %vm736 = vmor %vm734, %vm735
      %v737 = vsel %vm736, %v729, %v733
      %v738 = vand.u32 2147483647, %v671
      %vm739 = vcmp.eq.f32.partialorder %v738, 8.507059e+37
      %v740 = vand.u32 %v671, 2147483648
      %v741 = vor.u32 1.1754944e-38, %v740
      %v742 = vsel %vm739, %v741, %v737
      %v743 = vmul.f32 1.0, %v742
      %v744 = vrcp.pop %v672
      %v745 = vmul.f32 %v672, %v744
      %v746 = vsub.f32 1.0, %v745
      %v747 = vmul.f32 %v744, %v746
      %v748 = vadd.f32 %v744, %v747
      %vm749 = vweird.f32 %v672
      %vm750 = vweird.f32 %v744
      %vm751 = vmor %vm749, %vm750
      %v752 = vsel %vm751, %v744, %v748
      %v753 = vand.u32 2147483647, %v672
      %vm754 = vcmp.eq.f32.partialorder %v753, 8.507059e+37
      %v755 = vand.u32 %v672, 2147483648
      %v756 = vor.u32 1.1754944e-38, %v755
      %v757 = vsel %vm754, %v756, %v752
      %v758 = vmul.f32 1.0, %v757
      %v759 = vrcp.pop %v673
      %v760 = vmul.f32 %v673, %v759
      %v761 = vsub.f32 1.0, %v760
      %v762 = vmul.f32 %v759, %v761
      %v763 = vadd.f32 %v759, %v762
      %vm764 = vweird.f32 %v673
      %vm765 = vweird.f32 %v759
      %vm766 = vmor %vm764, %vm765
      %v767 = vsel %vm766, %v759, %v763
      %v768 = vand.u32 2147483647, %v673
      %vm769 = vcmp.eq.f32.partialorder %v768, 8.507059e+37
      %v770 = vand.u32 %v673, 2147483648
      %v771 = vor.u32 1.1754944e-38, %v770
      %v772 = vsel %vm769, %v771, %v767
      %v773 = vmul.f32 1.0, %v772
      %v774 = vrcp.pop %v674
      %v775 = vmul.f32 %v674, %v774
      %v776 = vsub.f32 1.0, %v775
      %v777 = vmul.f32 %v774, %v776
      %v778 = vadd.f32 %v774, %v777
      %vm779 = vweird.f32 %v674
      %vm780 = vweird.f32 %v774
      %vm781 = vmor %vm779, %vm780
      %v782 = vsel %vm781, %v774, %v778
      %v783 = vand.u32 2147483647, %v674
      %vm784 = vcmp.eq.f32.partialorder %v783, 8.507059e+37
      %v785 = vand.u32 %v674, 2147483648
      %v786 = vor.u32 1.1754944e-38, %v785
      %v787 = vsel %vm784, %v786, %v782
      %v788 = vmul.f32 1.0, %v787
      %v789 = vrcp.pop %v675
      %v790 = vmul.f32 %v675, %v789
      %v791 = vsub.f32 1.0, %v790
      %v792 = vmul.f32 %v789, %v791
      %v793 = vadd.f32 %v789, %v792
      %vm794 = vweird.f32 %v675
      %vm795 = vweird.f32 %v789
      %vm796 = vmor %vm794, %vm795
      %v797 = vsel %vm796, %v789, %v793
      %v798 = vand.u32 2147483647, %v675
      %vm799 = vcmp.eq.f32.partialorder %v798, 8.507059e+37
      %v800 = vand.u32 %v675, 2147483648
      %v801 = vor.u32 1.1754944e-38, %v800
      %v802 = vsel %vm799, %v801, %v797
      %v803 = vmul.f32 1.0, %v802
      %v804 = vrcp.pop %v676
      %v805 = vmul.f32 %v676, %v804
      %v806 = vsub.f32 1.0, %v805
      %v807 = vmul.f32 %v804, %v806
      %v808 = vadd.f32 %v804, %v807
      %vm809 = vweird.f32 %v676
      %vm810 = vweird.f32 %v804
      %vm811 = vmor %vm809, %vm810
      %v812 = vsel %vm811, %v804, %v808
      %v813 = vand.u32 2147483647, %v676
      %vm814 = vcmp.eq.f32.partialorder %v813, 8.507059e+37
      %v815 = vand.u32 %v676, 2147483648
      %v816 = vor.u32 1.1754944e-38, %v815
      %v817 = vsel %vm814, %v816, %v812
      %v818 = vmul.f32 1.0, %v817
      %v819 = vrcp.pop %v677
      %v820 = vmul.f32 %v677, %v819
      %v821 = vsub.f32 1.0, %v820
      %v822 = vmul.f32 %v819, %v821
      %v823 = vadd.f32 %v819, %v822
      %vm824 = vweird.f32 %v677
      %vm825 = vweird.f32 %v819
      %vm826 = vmor %vm824, %vm825
      %v827 = vsel %vm826, %v819, %v823
      %v828 = vand.u32 2147483647, %v677
      %vm829 = vcmp.eq.f32.partialorder %v828, 8.507059e+37
      %v830 = vand.u32 %v677, 2147483648
      %v831 = vor.u32 1.1754944e-38, %v830
      %v832 = vsel %vm829, %v831, %v827
      %v833 = vmul.f32 1.0, %v832
      %v834 = vrcp.pop %v678
      %v835 = vmul.f32 %v678, %v834
      %v836 = vsub.f32 1.0, %v835
      %v837 = vmul.f32 %v834, %v836
      %v838 = vadd.f32 %v834, %v837
      %vm839 = vweird.f32 %v678
      %vm840 = vweird.f32 %v834
      %vm841 = vmor %vm839, %vm840
      %v842 = vsel %vm841, %v834, %v838
      %v843 = vand.u32 2147483647, %v678
      %vm844 = vcmp.eq.f32.partialorder %v843, 8.507059e+37
      %v845 = vand.u32 %v678, 2147483648
      %v846 = vor.u32 1.1754944e-38, %v845
      %v847 = vsel %vm844, %v846, %v842
      %v848 = vmul.f32 1.0, %v847
      %v849 = vrcp.pop %v679
      %v850 = vmul.f32 %v679, %v849
      %v851 = vsub.f32 1.0, %v850
      %v852 = vmul.f32 %v849, %v851
      %v853 = vadd.f32 %v849, %v852
      %vm854 = vweird.f32 %v679
      %vm855 = vweird.f32 %v849
      %vm856 = vmor %vm854, %vm855
      %v857 = vsel %vm856, %v849, %v853
      %v858 = vand.u32 2147483647, %v679
      %vm859 = vcmp.eq.f32.partialorder %v858, 8.507059e+37
      %v860 = vand.u32 %v679, 2147483648
      %v861 = vor.u32 1.1754944e-38, %v860
      %v862 = vsel %vm859, %v861, %v857
      %v863 = vmul.f32 1.0, %v862
      %v864 = vrcp.pop %v680
      %v865 = vmul.f32 %v680, %v864
      %v866 = vsub.f32 1.0, %v865
      %v867 = vmul.f32 %v864, %v866
      %v868 = vadd.f32 %v864, %v867
      %vm869 = vweird.f32 %v680
      %vm870 = vweird.f32 %v864
      %vm871 = vmor %vm869, %vm870
      %v872 = vsel %vm871, %v864, %v868
      %v873 = vand.u32 2147483647, %v680
      %vm874 = vcmp.eq.f32.partialorder %v873, 8.507059e+37
      %v875 = vand.u32 %v680, 2147483648
      %v876 = vor.u32 1.1754944e-38, %v875
      %v877 = vsel %vm874, %v876, %v872
      %v878 = vmul.f32 1.0, %v877
      %v879 = vrcp.pop %v681
      %v880 = vmul.f32 %v681, %v879
      %v881 = vsub.f32 1.0, %v880
      %v882 = vmul.f32 %v879, %v881
      %v883 = vadd.f32 %v879, %v882
      %vm884 = vweird.f32 %v681
      %vm885 = vweird.f32 %v879
      %vm886 = vmor %vm884, %vm885
      %v887 = vsel %vm886, %v879, %v883
      %v888 = vand.u32 2147483647, %v681
      %vm889 = vcmp.eq.f32.partialorder %v888, 8.507059e+37
      %v890 = vand.u32 %v681, 2147483648
      %v891 = vor.u32 1.1754944e-38, %v890
      %v892 = vsel %vm889, %v891, %v887
      %v893 = vmul.f32 1.0, %v892
      %v894 = vrcp.pop %v682
      %v895 = vmul.f32 %v682, %v894
      %v896 = vsub.f32 1.0, %v895
      %v897 = vmul.f32 %v894, %v896
      %v898 = vadd.f32 %v894, %v897
      %vm899 = vweird.f32 %v682
      %vm900 = vweird.f32 %v894
      %vm901 = vmor %vm899, %vm900
      %v902 = vsel %vm901, %v894, %v898
      %v903 = vand.u32 2147483647, %v682
      %vm904 = vcmp.eq.f32.partialorder %v903, 8.507059e+37
      %v905 = vand.u32 %v682, 2147483648
      %v906 = vor.u32 1.1754944e-38, %v905
      %v907 = vsel %vm904, %v906, %v902
      %v908 = vmul.f32 1.0, %v907
      %v909 = vrcp.pop %v683
      %v910 = vmul.f32 %v683, %v909
      %v911 = vsub.f32 1.0, %v910
      %v912 = vmul.f32 %v909, %v911
      %v913 = vadd.f32 %v909, %v912
      %vm914 = vweird.f32 %v683
      %vm915 = vweird.f32 %v909
      %vm916 = vmor %vm914, %vm915
      %v917 = vsel %vm916, %v909, %v913
      %v918 = vand.u32 2147483647, %v683
      %vm919 = vcmp.eq.f32.partialorder %v918, 8.507059e+37
      %v920 = vand.u32 %v683, 2147483648
      %v921 = vor.u32 1.1754944e-38, %v920
      %v922 = vsel %vm919, %v921, %v917
      %v923 = vmul.f32 1.0, %v922
      %v924 = vlaneseq
      %v925 = vand.u32 %v924, 127
      %vm926 = vcmp.eq.s32.totalorder %v925, 0
      %v927 = vsub.f32 1.0, %v698
      %v928 = vsub.f32 1.0, %v713
      %v929 = vsub.f32 1.0, %v728
      %v930 = vsub.f32 1.0, %v743
      %v931 = vsub.f32 1.0, %v758
      %v932 = vsub.f32 1.0, %v773
      %v933 = vsub.f32 1.0, %v788
      %v934 = vsub.f32 1.0, %v803
      %v935 = vsub.f32 1.0, %v818
      %v936 = vsub.f32 1.0, %v833
      %v937 = vsub.f32 1.0, %v848
      %v938 = vsub.f32 1.0, %v863
      %v939 = vsub.f32 1.0, %v878
      %v940 = vsub.f32 1.0, %v893
      %v941 = vsub.f32 1.0, %v908
      %v942 = vsub.f32 1.0, %v923
      %944 = vset.pattern.permute.xlu0 0
      %945 = vperm.xlu0 %944, %v927
      %v946 = vpop.permute.xlu0 %945
      %949 = vset.pattern.permute.xlu0 0
      %950 = vperm.xlu0 %949, %v928
      %v951 = vpop.permute.xlu0 %950
      %954 = vset.pattern.permute.xlu0 0
      %955 = vperm.xlu0 %954, %v929
      %v956 = vpop.permute.xlu0 %955
      %959 = vset.pattern.permute.xlu0 0
      %960 = vperm.xlu0 %959, %v930
      %v961 = vpop.permute.xlu0 %960
      %964 = vset.pattern.permute.xlu0 0
      %965 = vperm.xlu0 %964, %v931
      %v966 = vpop.permute.xlu0 %965
      %969 = vset.pattern.permute.xlu0 0
      %970 = vperm.xlu0 %969, %v932
      %v971 = vpop.permute.xlu0 %970
      %974 = vset.pattern.permute.xlu0 0
      %975 = vperm.xlu0 %974, %v933
      %v976 = vpop.permute.xlu0 %975
      %979 = vset.pattern.permute.xlu0 0
      %980 = vperm.xlu0 %979, %v934
      %v981 = vpop.permute.xlu0 %980
      %984 = vset.pattern.permute.xlu0 0
      %985 = vperm.xlu0 %984, %v935
      %v986 = vpop.permute.xlu0 %985
      %989 = vset.pattern.permute.xlu0 0
      %990 = vperm.xlu0 %989, %v936
      %v991 = vpop.permute.xlu0 %990
      %994 = vset.pattern.permute.xlu0 0
      %995 = vperm.xlu0 %994, %v937
      %v996 = vpop.permute.xlu0 %995
      %999 = vset.pattern.permute.xlu0 0
      %1000 = vperm.xlu0 %999, %v938
      %v1001 = vpop.permute.xlu0 %1000
      %1004 = vset.pattern.permute.xlu0 0
      %1005 = vperm.xlu0 %1004, %v939
      %v1006 = vpop.permute.xlu0 %1005
      %1009 = vset.pattern.permute.xlu0 0
      %1010 = vperm.xlu0 %1009, %v940
      %v1011 = vpop.permute.xlu0 %1010
      %1014 = vset.pattern.permute.xlu0 0
      %1015 = vperm.xlu0 %1014, %v941
      %v1016 = vpop.permute.xlu0 %1015
      %1019 = vset.pattern.permute.xlu0 0
      %1020 = vperm.xlu0 %1019, %v942
      %v1021 = vpop.permute.xlu0 %1020
      %1024 = vset.pattern.permute.xlu0 0
      %1025 = vperm.xlu0 %1024, %v698
      %v1026 = vpop.permute.xlu0 %1025
      %1029 = vset.pattern.permute.xlu0 0
      %1030 = vperm.xlu0 %1029, %v713
      %v1031 = vpop.permute.xlu0 %1030
      %1034 = vset.pattern.permute.xlu0 0
      %1035 = vperm.xlu0 %1034, %v728
      %v1036 = vpop.permute.xlu0 %1035
      %1039 = vset.pattern.permute.xlu0 0
      %1040 = vperm.xlu0 %1039, %v743
      %v1041 = vpop.permute.xlu0 %1040
      %1044 = vset.pattern.permute.xlu0 0
      %1045 = vperm.xlu0 %1044, %v758
      %v1046 = vpop.permute.xlu0 %1045
      %1049 = vset.pattern.permute.xlu0 0
      %1050 = vperm.xlu0 %1049, %v773
      %v1051 = vpop.permute.xlu0 %1050
      %1054 = vset.pattern.permute.xlu0 0
      %1055 = vperm.xlu0 %1054, %v788
      %v1056 = vpop.permute.xlu0 %1055
      %1059 = vset.pattern.permute.xlu0 0
      %1060 = vperm.xlu0 %1059, %v803
      %v1061 = vpop.permute.xlu0 %1060
      %1064 = vset.pattern.permute.xlu0 0
      %1065 = vperm.xlu0 %1064, %v818
      %v1066 = vpop.permute.xlu0 %1065
      %1069 = vset.pattern.permute.xlu0 0
      %1070 = vperm.xlu0 %1069, %v833
      %v1071 = vpop.permute.xlu0 %1070
      %1074 = vset.pattern.permute.xlu0 0
      %1075 = vperm.xlu0 %1074, %v848
      %v1076 = vpop.permute.xlu0 %1075
      %1079 = vset.pattern.permute.xlu0 0
      %1080 = vperm.xlu0 %1079, %v863
      %v1081 = vpop.permute.xlu0 %1080
      %1084 = vset.pattern.permute.xlu0 0
      %1085 = vperm.xlu0 %1084, %v878
      %v1086 = vpop.permute.xlu0 %1085
      %1089 = vset.pattern.permute.xlu0 0
      %1090 = vperm.xlu0 %1089, %v893
      %v1091 = vpop.permute.xlu0 %1090
      %1094 = vset.pattern.permute.xlu0 0
      %1095 = vperm.xlu0 %1094, %v908
      %v1096 = vpop.permute.xlu0 %1095
      %1099 = vset.pattern.permute.xlu0 0
      %1100 = vperm.xlu0 %1099, %v923
      %v1101 = vpop.permute.xlu0 %1100
      %v1103 = vsel %vm926, %v946, %v1026
      %v1104 = vsel %vm926, %v951, %v1031
      %v1105 = vsel %vm926, %v956, %v1036
      %v1106 = vsel %vm926, %v961, %v1041
      %v1107 = vsel %vm926, %v966, %v1046
      %v1108 = vsel %vm926, %v971, %v1051
      %v1109 = vsel %vm926, %v976, %v1056
      %v1110 = vsel %vm926, %v981, %v1061
      %v1111 = vsel %vm926, %v986, %v1066
      %v1112 = vsel %vm926, %v991, %v1071
      %v1113 = vsel %vm926, %v996, %v1076
      %v1114 = vsel %vm926, %v1001, %v1081
      %v1115 = vsel %vm926, %v1006, %v1086
      %v1116 = vsel %vm926, %v1011, %v1091
      %v1117 = vsel %vm926, %v1016, %v1096
      %v1118 = vsel %vm926, %v1021, %v1101
      %vm1119 = vcmask 15360
      %1120 = vst.msk [vmem:[%s5] sm:$0xff] %vm1119, %v1103
      %1121 = vst.msk [vmem:[%s5 + $0x8] sm:$0xff] %vm1119, %v1104
      %1122 = vst.msk [vmem:[%s5 + $0x10] sm:$0xff] %vm1119, %v1105
      %1123 = vst.msk [vmem:[%s5 + $0x18] sm:$0xff] %vm1119, %v1106
      %1124 = vst.msk [vmem:[%s5 + $0x20] sm:$0xff] %vm1119, %v1107
      %1125 = vst.msk [vmem:[%s5 + $0x28] sm:$0xff] %vm1119, %v1108
      %1126 = vst.msk [vmem:[%s5 + $0x30] sm:$0xff] %vm1119, %v1109
      %1127 = vst.msk [vmem:[%s5 + $0x38] sm:$0xff] %vm1119, %v1110
      %1128 = vst.msk [vmem:[%s5 + $0x40] sm:$0xff] %vm1119, %v1111
      %1129 = vst.msk [vmem:[%s5 + $0x48] sm:$0xff] %vm1119, %v1112
      %1130 = vst.msk [vmem:[%s5 + $0x50] sm:$0xff] %vm1119, %v1113
      %1131 = vst.msk [vmem:[%s5 + $0x58] sm:$0xff] %vm1119, %v1114
      %1132 = vst.msk [vmem:[%s5 + $0x60] sm:$0xff] %vm1119, %v1115
      %1133 = vst.msk [vmem:[%s5 + $0x68] sm:$0xff] %vm1119, %v1116
      %1134 = vst.msk [vmem:[%s5 + $0x70] sm:$0xff] %vm1119, %v1117
      %1135 = vst.msk [vmem:[%s5 + $0x78] sm:$0xff] %vm1119, %v1118
    $region29: #{tpu_custom_call.1} parent=1 // pred_fallthru
      _
    // Predicated region
    $region30: #{tpu_custom_call.1} parent=1 // pred_check
      _
    $region31: #{tpu_custom_call.1} parent=1 // pred_check_branch
      %1137 = sbr.rel (0) target = $region33
    $region32: #{tpu_custom_call.1} parent=1 // pred_region
      _
    $region33: #{tpu_custom_call.1} parent=1 // pred_fallthru
      _
    // Predicated region
    $region34: #{tpu_custom_call.1} parent=1 // pred_check
      _
    $region35: #{tpu_custom_call.1} parent=1 // pred_check_branch
      %1139 = sbr.rel (0) target = $region37
    $region36: #{tpu_custom_call.1} parent=1 // pred_region
      %1141 = vsyncadd [#allocation5], 0
      %s1142 = sshll.u32 [#allocation4], 4
      %s1143 = int_to_ptr.vmem [resolvable:$true] %s1142
      %s1144 = sshll.u32 %s6, 4
      %s1145 = int_to_ptr.hbm [resolvable:$true] %s1144
      %1150 = dma.vmem_to_hbm [thread:$0]  %s1143, 2048, %s1145, [#allocation5], 128, 128, 8
    $region37: #{tpu_custom_call.1} parent=1 // pred_fallthru
      _
    // Predicated region
    $region38: #{tpu_custom_call.1} parent=1 // pred_check
      _
    $region39: #{tpu_custom_call.1} parent=1 // pred_check_branch
      %1152 = sbr.rel (0) target = $region41
    $region40: #{tpu_custom_call.1} parent=1 // pred_region
      _
    $region41: #{tpu_custom_call.1} parent=1 // pred_fallthru
      _
    // Predicated region
    $region42: #{tpu_custom_call.1} parent=1 // pred_check
      _
    $region43: #{tpu_custom_call.1} parent=1 // pred_check_branch
      %1154 = sbr.rel (0) target = $region45
    $region44: #{tpu_custom_call.1} parent=1 // pred_region
      %1156 = dma.done [#allocation5], 2048
    $region45: #{tpu_custom_call.1} parent=1 // pred_fallthru
      _
    %1157 = vsyncpa [#allocation5], 1

</llo_original>
